<compile_context>
chip_gen: v6e
topology: v6e:2x2x1
jax: 0.10.0
libtpu: 0.0.40
codegen_flags: <defaults>
</compile_context>

<pallas_src>
import functools

import jax
import jax.numpy as jnp
from jax import lax
from jax.experimental import pallas as pl
from jax.experimental.pallas import tpu as pltpu

LN_EPS = 1e-5  # nn.LayerNorm default eps


def _round_up(v, m):
    return ((v + m - 1) // m) * m


def _gelu_exact(x):
    # PyTorch nn.GELU() default: exact (erf-based) formulation.
    return 0.5 * x * (1.0 + lax.erf(x * 0.7071067811865476))


def _gelu_tanh(x):
    # Opt-in cheaper approximation (v5e: single EUP, erf chain runs twice).
    c = 0.7978845608028654  # sqrt(2/pi)
    return 0.5 * x * (1.0 + jnp.tanh(c * (x + 0.044715 * x * x * x)))


def auto_pack(nin, hidden, nout, max_pack=32):
    """Smallest row-pack factor P such that P*nin, P*hidden, P*nout are all
    multiples of the 128-lane width.  Falls back to 1 (unpacked kernel)."""
    for p in range(1, max_pack + 1):
        if (p * nin) % 128 == 0 and (p * hidden) % 128 == 0 and (p * nout) % 128 == 0:
            return p
    return 1


def pack_params(params, *, pack=None, compute_dtype=jnp.float32):
    """One-time parameter packing.  Call OUTSIDE the per-step hot path.

    Builds block-diagonal weights kron(I_pack, W) so `pack` independent rows
    are processed side by side along the lane axis, plus the block-diagonal
    ones matrix used for per-row LayerNorm segment sums.
    """
    w1, b1, w2, b2, w3, b3, gamma, beta = params
    nin, hidden = w1.shape
    nout = w3.shape[1]
    if pack is None:
        pack = auto_pack(nin, hidden, nout)
    f32 = jnp.float32
    eye = jnp.eye(pack, dtype=f32)
    w1_bd = jnp.kron(eye, w1.astype(f32)).astype(compute_dtype)
    w2_bd = jnp.kron(eye, w2.astype(f32)).astype(compute_dtype)
    w3_bd = jnp.kron(eye, w3.astype(f32)).astype(compute_dtype)
    seg = jnp.kron(eye, jnp.ones((nout, nout), f32))  # LN segment-sum matrix
    b1t = jnp.tile(b1.astype(f32), (1, pack))
    b2t = jnp.tile(b2.astype(f32), (1, pack))
    b3t = jnp.tile(b3.astype(f32), (1, pack))
    gt = jnp.tile(gamma.astype(f32), (1, pack))
    bt = jnp.tile(beta.astype(f32), (1, pack))
    return (w1_bd, w2_bd, w3_bd, seg, b1t, b2t, b3t, gt, bt)


def _mlpnorm_kernel(x_ref, w1_ref, w2_ref, w3_ref, s_ref, b1_ref, b2_ref,
                    b3_ref, g_ref, bt_ref, o_ref, *, inv_n, approx_gelu):
    # NOTE: every op below is strictly packed-row-local (matmuls only mix
    # lanes within a packed row's block, LayerNorm stats are per nout-lane
    # segment), so garbage rows in the ragged last grid block are never mixed
    # into valid rows and never written back.
    f32 = jnp.float32
    gelu = _gelu_tanh if approx_gelu else _gelu_exact

    w1 = w1_ref[...]
    w2 = w2_ref[...]
    w3 = w3_ref[...]
    cdt = w1.dtype  # MXU input dtype (f32 or bf16); accumulation is f32.

    x = x_ref[...].astype(cdt)                                     # (tm, P*nin)
    h = jnp.dot(x, w1, preferred_element_type=f32) + b1_ref[...]
    h = gelu(h)
    h = jnp.dot(h.astype(cdt), w2, preferred_element_type=f32) + b2_ref[...]
    h = gelu(h)
    y = jnp.dot(h.astype(cdt), w3, preferred_element_type=f32) + b3_ref[...]

    # Per-row LayerNorm over each nout-lane segment, centered two-pass form.
    # Segment sums via matmul with the block-diagonal ones matrix: keeps the
    # VPU/EUP fully 128-lane dense and avoids cross-lane XLU reductions.
    s = s_ref[...]
    mean = jnp.dot(y, s, preferred_element_type=f32) * inv_n
    d = y - mean
    var = jnp.dot(d * d, s, preferred_element_type=f32) * inv_n
    o_ref[...] = (d * lax.rsqrt(var + LN_EPS) * g_ref[...]
                  + bt_ref[...]).astype(o_ref.dtype)


@functools.partial(jax.jit, static_argnames=("tm", "approx_gelu"))
def mlpnorm(x, packed_params, *, tm=512, approx_gelu=False):
    """x: [..., nin] -> [..., nout] (3-layer MLP + LayerNorm).

    `packed_params` comes from pack_params() (computed once, outside jit).
    `tm` is the tile size in *packed* rows (1 packed row = `pack` input rows).
    """
    w1_bd, w2_bd, w3_bd, seg, b1t, b2t, b3t, gt, bt = packed_params
    nin_p, hidden_p = w1_bd.shape
    nout_p = w3_bd.shape[1]
    nin = x.shape[-1]
    pack = nin_p // nin
    nout = nout_p // pack

    lead = x.shape[:-1]
    rows = 1
    for d in lead:
        rows *= d

    # Pack `pack` rows per lane row (lane-dense datapath).  The reshape is a
    # free row-major relayout; padding only happens when rows % pack != 0.
    rows_pad = _round_up(max(rows, 1), pack)
    xf = x.reshape(rows, nin)
    if rows_pad != rows:
        xf = jnp.pad(xf, ((0, rows_pad - rows), (0, 0)))
    rp = rows_pad // pack
    xp = xf.reshape(rp, nin_p)

    # Balanced row tiles: large to amortize the ~0.35us/step pipeline cost,
    # near-equal when the grid has >1 step (avoids one core taking a full
    # tile and another only the ragged tail on multi-TensorCore parts).
    nsteps = pl.cdiv(rp, tm)
    tm_eff = _round_up(pl.cdiv(rp, nsteps), 8)
    grid = (pl.cdiv(rp, tm_eff),)

    out_dtype = x.dtype
    xb = jnp.dtype(x.dtype).itemsize
    ob = jnp.dtype(out_dtype).itemsize
    wb = jnp.dtype(w1_bd.dtype).itemsize

    # Explicit VMEM budget: double-buffered x/out tiles + (double-buffered but
    # grid-invariant) weights/biases + live f32 intermediates, 2x headroom,
    # clamped for v7x's 64 MiB per-core VMEM.
    w_bytes = (nin_p * hidden_p + hidden_p * hidden_p + hidden_p * nout_p) * wb \
              + nout_p * nout_p * 4
    b_bytes = (2 * hidden_p + 3 * nout_p) * 4
    io_bytes = 2 * tm_eff * (nin_p * xb + nout_p * ob)
    live_bytes = tm_eff * (2 * hidden_p + 3 * nout_p) * 4
    vmem_limit = int(min(64 << 20,
                         max(16 << 20,
                             2 * (2 * (w_bytes + b_bytes) + io_bytes + live_bytes))))

    cost = pl.CostEstimate(
        flops=2 * rp * (nin_p * hidden_p + hidden_p * hidden_p
                        + hidden_p * nout_p + 2 * nout_p * nout_p),
        transcendentals=2 * rp * hidden_p,
        bytes_accessed=rp * (nin_p * xb + nout_p * ob) + w_bytes + b_bytes,
    )

    inv = lambda i: (0, 0)  # grid-invariant params: DMA'd once, kept resident
    out = pl.pallas_call(
        functools.partial(_mlpnorm_kernel, inv_n=1.0 / nout,
                          approx_gelu=approx_gelu),
        out_shape=jax.ShapeDtypeStruct((rp, nout_p), out_dtype),
        grid_spec=pltpu.PrefetchScalarGridSpec(
            num_scalar_prefetch=0,
            grid=grid,
            in_specs=[
                pl.BlockSpec((tm_eff, nin_p), lambda i: (i, 0)),  # x row tile
                pl.BlockSpec(w1_bd.shape, inv),
                pl.BlockSpec(w2_bd.shape, inv),
                pl.BlockSpec(w3_bd.shape, inv),
                pl.BlockSpec(seg.shape, inv),
                pl.BlockSpec(b1t.shape, inv),
                pl.BlockSpec(b2t.shape, inv),
                pl.BlockSpec(b3t.shape, inv),
                pl.BlockSpec(gt.shape, inv),
                pl.BlockSpec(bt.shape, inv),
            ],
            out_specs=pl.BlockSpec((tm_eff, nout_p), lambda i: (i, 0)),
        ),
        compiler_params=pltpu.CompilerParams(
            dimension_semantics=("parallel",),
            vmem_limit_bytes=vmem_limit),
        cost_estimate=cost,
    )(xp, w1_bd, w2_bd, w3_bd, seg, b1t, b2t, b3t, gt, bt)

    out = out.reshape(rows_pad, nout)
    if rows_pad != rows:
        out = out[:rows]
    return out.reshape(*lead, nout)


def init_params(key, nin, nout, hidden_dim, dtype=jnp.float32):
    ks = jax.random.split(key, 6)
    scale1 = 1.0 / jnp.sqrt(nin)
    scale2 = 1.0 / jnp.sqrt(hidden_dim)
    # Stored transposed relative to torch nn.Linear (out,in) -> here (in,out).
    w1 = jax.random.uniform(ks[0], (nin, hidden_dim), dtype, -scale1, scale1)
    b1 = jax.random.uniform(ks[1], (1, hidden_dim), dtype, -scale1, scale1)
    w2 = jax.random.uniform(ks[2], (hidden_dim, hidden_dim), dtype, -scale2, scale2)
    b2 = jax.random.uniform(ks[3], (1, hidden_dim), dtype, -scale2, scale2)
    w3 = jax.random.uniform(ks[4], (hidden_dim, nout), dtype, -scale2, scale2)
    b3 = jax.random.uniform(ks[5], (1, nout), dtype, -scale2, scale2)
    gamma = jnp.ones((1, nout), dtype)   # LayerNorm weight init = 1
    beta = jnp.zeros((1, nout), dtype)   # LayerNorm bias init = 0
    return (w1, b1, w2, b2, w3, b3, gamma, beta)


def mlpnorm_ref(x, params, compute_dtype=jnp.float32):
    w1, b1, w2, b2, w3, b3, gamma, beta = params
    f32 = jnp.float32

    def dot(a, b):
        return jnp.dot(a.astype(compute_dtype), b.astype(compute_dtype),
                       preferred_element_type=f32)

    h = _gelu_exact(dot(x, w1) + b1)
    h = _gelu_exact(dot(h, w2) + b2)
    y = dot(h, w3) + b3
    mean = jnp.mean(y, axis=-1, keepdims=True)
    var = jnp.mean((y - mean) ** 2, axis=-1, keepdims=True)
    return (y - mean) / jnp.sqrt(var + LN_EPS) * gamma + beta


if __name__ == "__main__":
    nin, nout, hidden_dim = 16, 16, 32
    batch, nodes = 2, 61   # 122 rows -> exercises the pack-tail padding path

    key = jax.random.PRNGKey(0)
    kx, kp = jax.random.split(key)
    x = jax.random.normal(kx, (batch, nodes, nin), jnp.float32)
    params = init_params(kp, nin, nout, hidden_dim)

    # One-time parameter packing (outside the per-call hot path).
    packed_f32 = pack_params(params)                       # f32 MXU inputs
    out = jax.block_until_ready(mlpnorm(x, packed_f32))
    ref = mlpnorm_ref(x, params)
    assert out.shape == (batch, nodes, nout)
    assert jnp.allclose(out, ref, atol=1e-4, rtol=1e-4), (
        float(jnp.max(jnp.abs(out - ref))))

    # bf16 MXU-input path (f32 accumulation), relevant on v6e/v7x; compared
    # against a reference that also uses bf16 matmul inputs.
    packed_bf16 = pack_params(params, compute_dtype=jnp.bfloat16)
    out_bf16 = jax.block_until_ready(mlpnorm(x, packed_bf16))
    ref_bf16 = mlpnorm_ref(x, params, compute_dtype=jnp.bfloat16)
    assert out_bf16.shape == (batch, nodes, nout)
    assert jnp.allclose(out_bf16, ref_bf16, atol=2e-2, rtol=2e-2), (
        float(jnp.max(jnp.abs(out_bf16 - ref_bf16))))

    print("KERNEL_OK")
</pallas_src>

<mosaic_0001>
module attributes {stable_mosaic.version = 11 : i64} {
  func.func @_mlpnorm_kernel(%arg0: i32, %arg1: memref<16x128xf32, #tpu.memory_space<vmem>>, %arg2: memref<128x256xf32, #tpu.memory_space<vmem>>, %arg3: memref<256x256xf32, #tpu.memory_space<vmem>>, %arg4: memref<256x128xf32, #tpu.memory_space<vmem>>, %arg5: memref<128x128xf32, #tpu.memory_space<vmem>>, %arg6: memref<1x256xf32, #tpu.memory_space<vmem>>, %arg7: memref<1x256xf32, #tpu.memory_space<vmem>>, %arg8: memref<1x128xf32, #tpu.memory_space<vmem>>, %arg9: memref<1x128xf32, #tpu.memory_space<vmem>>, %arg10: memref<1x128xf32, #tpu.memory_space<vmem>>, %arg11: memref<16x128xf32, #tpu.memory_space<vmem>>) attributes {dimension_semantics = [#tpu.dimension_semantics<parallel>], iteration_bounds = array<i64: 1>, scalar_prefetch = 0 : i64, scratch_operands = 0 : i64, tpu.core_type = #tpu.core_type<tc>, window_params = [{transform_indices = @transform_0, window_bounds = array<i64: 16, 128>}, {pipeline_mode = #tpu.pipeline_mode<synchronous>, transform_indices = @transform_1, window_bounds = array<i64: 128, 256>}, {pipeline_mode = #tpu.pipeline_mode<synchronous>, transform_indices = @transform_2, window_bounds = array<i64: 256, 256>}, {pipeline_mode = #tpu.pipeline_mode<synchronous>, transform_indices = @transform_3, window_bounds = array<i64: 256, 128>}, {pipeline_mode = #tpu.pipeline_mode<synchronous>, transform_indices = @transform_4, window_bounds = array<i64: 128, 128>}, {pipeline_mode = #tpu.pipeline_mode<synchronous>, transform_indices = @transform_5, window_bounds = array<i64: 1, 256>}, {pipeline_mode = #tpu.pipeline_mode<synchronous>, transform_indices = @transform_6, window_bounds = array<i64: 1, 256>}, {pipeline_mode = #tpu.pipeline_mode<synchronous>, transform_indices = @transform_7, window_bounds = array<i64: 1, 128>}, {pipeline_mode = #tpu.pipeline_mode<synchronous>, transform_indices = @transform_8, window_bounds = array<i64: 1, 128>}, {pipeline_mode = #tpu.pipeline_mode<synchronous>, transform_indices = @transform_9, window_bounds = array<i64: 1, 128>}, {transform_indices = @transform_10, window_bounds = array<i64: 16, 128>}]} {
    %c0 = arith.constant 0 : index
    %c0_0 = arith.constant 0 : index
    %0 = vector.load %arg2[%c0, %c0_0] : memref<128x256xf32, #tpu.memory_space<vmem>>, vector<128x256xf32>
    %c0_1 = arith.constant 0 : index
    %c0_2 = arith.constant 0 : index
    %1 = vector.load %arg3[%c0_1, %c0_2] : memref<256x256xf32, #tpu.memory_space<vmem>>, vector<256x256xf32>
    %c0_3 = arith.constant 0 : index
    %c0_4 = arith.constant 0 : index
    %2 = vector.load %arg4[%c0_3, %c0_4] : memref<256x128xf32, #tpu.memory_space<vmem>>, vector<256x128xf32>
    %c0_5 = arith.constant 0 : index
    %c0_6 = arith.constant 0 : index
    %3 = vector.load %arg1[%c0_5, %c0_6] : memref<16x128xf32, #tpu.memory_space<vmem>>, vector<16x128xf32>
    %cst = arith.constant dense<0.000000e+00> : vector<16x256xf32>
    %4 = tpu.matmul %3, %0, %cst {dimension_numbers = #tpu.dot_dimension_numbers<[1], [0], [0], [1], [0, 0, 1, 1], [], []>} : vector<16x128xf32>, vector<128x256xf32>, vector<16x256xf32> -> vector<16x256xf32>
    %c0_7 = arith.constant 0 : index
    %c0_8 = arith.constant 0 : index
    %5 = vector.load %arg6[%c0_7, %c0_8] : memref<1x256xf32, #tpu.memory_space<vmem>>, vector<1x256xf32>
    %6 = vector.broadcast %5 : vector<1x256xf32> to vector<16x256xf32>
    %7 = arith.addf %4, %6 : vector<16x256xf32>
    %cst_9 = arith.constant 5.000000e-01 : f32
    %8 = vector.broadcast %cst_9 : f32 to vector<16x256xf32>
    %9 = arith.mulf %8, %7 : vector<16x256xf32>
    %cst_10 = arith.constant 0.707106769 : f32
    %10 = vector.broadcast %cst_10 : f32 to vector<16x256xf32>
    %11 = arith.mulf %7, %10 : vector<16x256xf32>
    %12 = math.erf %11 : vector<16x256xf32>
    %cst_11 = arith.constant 1.000000e+00 : f32
    %13 = vector.broadcast %cst_11 : f32 to vector<16x256xf32>
    %14 = arith.addf %13, %12 : vector<16x256xf32>
    %15 = arith.mulf %9, %14 : vector<16x256xf32>
    %cst_12 = arith.constant dense<0.000000e+00> : vector<16x256xf32>
    %16 = tpu.matmul %15, %1, %cst_12 {dimension_numbers = #tpu.dot_dimension_numbers<[1], [0], [0], [1], [0, 0, 1, 1], [], []>} : vector<16x256xf32>, vector<256x256xf32>, vector<16x256xf32> -> vector<16x256xf32>
    %c0_13 = arith.constant 0 : index
    %c0_14 = arith.constant 0 : index
    %17 = vector.load %arg7[%c0_13, %c0_14] : memref<1x256xf32, #tpu.memory_space<vmem>>, vector<1x256xf32>
    %18 = vector.broadcast %17 : vector<1x256xf32> to vector<16x256xf32>
    %19 = arith.addf %16, %18 : vector<16x256xf32>
    %cst_15 = arith.constant 5.000000e-01 : f32
    %20 = vector.broadcast %cst_15 : f32 to vector<16x256xf32>
    %21 = arith.mulf %20, %19 : vector<16x256xf32>
    %cst_16 = arith.constant 0.707106769 : f32
    %22 = vector.broadcast %cst_16 : f32 to vector<16x256xf32>
    %23 = arith.mulf %19, %22 : vector<16x256xf32>
    %24 = math.erf %23 : vector<16x256xf32>
    %cst_17 = arith.constant 1.000000e+00 : f32
    %25 = vector.broadcast %cst_17 : f32 to vector<16x256xf32>
    %26 = arith.addf %25, %24 : vector<16x256xf32>
    %27 = arith.mulf %21, %26 : vector<16x256xf32>
    %cst_18 = arith.constant dense<0.000000e+00> : vector<16x128xf32>
    %28 = tpu.matmul %27, %2, %cst_18 {dimension_numbers = #tpu.dot_dimension_numbers<[1], [0], [0], [1], [0, 0, 1, 1], [], []>} : vector<16x256xf32>, vector<256x128xf32>, vector<16x128xf32> -> vector<16x128xf32>
    %c0_19 = arith.constant 0 : index
    %c0_20 = arith.constant 0 : index
    %29 = vector.load %arg8[%c0_19, %c0_20] : memref<1x128xf32, #tpu.memory_space<vmem>>, vector<1x128xf32>
    %30 = vector.broadcast %29 : vector<1x128xf32> to vector<16x128xf32>
    %31 = arith.addf %28, %30 : vector<16x128xf32>
    %c0_21 = arith.constant 0 : index
    %c0_22 = arith.constant 0 : index
    %32 = vector.load %arg5[%c0_21, %c0_22] : memref<128x128xf32, #tpu.memory_space<vmem>>, vector<128x128xf32>
    %cst_23 = arith.constant dense<0.000000e+00> : vector<16x128xf32>
    %33 = tpu.matmul %31, %32, %cst_23 {dimension_numbers = #tpu.dot_dimension_numbers<[1], [0], [0], [1], [0, 0, 1, 1], [], []>} : vector<16x128xf32>, vector<128x128xf32>, vector<16x128xf32> -> vector<16x128xf32>
    %cst_24 = arith.constant 6.250000e-02 : f32
    %34 = vector.broadcast %cst_24 : f32 to vector<16x128xf32>
    %35 = arith.mulf %33, %34 : vector<16x128xf32>
    %36 = arith.subf %31, %35 : vector<16x128xf32>
    %37 = arith.mulf %36, %36 : vector<16x128xf32>
    %cst_25 = arith.constant dense<0.000000e+00> : vector<16x128xf32>
    %38 = tpu.matmul %37, %32, %cst_25 {dimension_numbers = #tpu.dot_dimension_numbers<[1], [0], [0], [1], [0, 0, 1, 1], [], []>} : vector<16x128xf32>, vector<128x128xf32>, vector<16x128xf32> -> vector<16x128xf32>
    %cst_26 = arith.constant 6.250000e-02 : f32
    %39 = vector.broadcast %cst_26 : f32 to vector<16x128xf32>
    %40 = arith.mulf %38, %39 : vector<16x128xf32>
    %cst_27 = arith.constant 9.99999974E-6 : f32
    %41 = vector.broadcast %cst_27 : f32 to vector<16x128xf32>
    %42 = arith.addf %40, %41 : vector<16x128xf32>
    %43 = math.rsqrt %42 : vector<16x128xf32>
    %44 = arith.mulf %36, %43 : vector<16x128xf32>
    %c0_28 = arith.constant 0 : index
    %c0_29 = arith.constant 0 : index
    %45 = vector.load %arg9[%c0_28, %c0_29] : memref<1x128xf32, #tpu.memory_space<vmem>>, vector<1x128xf32>
    %46 = vector.broadcast %45 : vector<1x128xf32> to vector<16x128xf32>
    %47 = arith.mulf %44, %46 : vector<16x128xf32>
    %c0_30 = arith.constant 0 : index
    %c0_31 = arith.constant 0 : index
    %48 = vector.load %arg10[%c0_30, %c0_31] : memref<1x128xf32, #tpu.memory_space<vmem>>, vector<1x128xf32>
    %49 = vector.broadcast %48 : vector<1x128xf32> to vector<16x128xf32>
    %50 = arith.addf %47, %49 : vector<16x128xf32>
    %c0_32 = arith.constant 0 : index
    %c0_33 = arith.constant 0 : index
    %51 = vector.load %arg11[%c0_32, %c0_33] : memref<16x128xf32, #tpu.memory_space<vmem>>, vector<16x128xf32>
    tpu.vector_store %arg11[%c0_32, %c0_33], %50 {strides = array<i32>} : memref<16x128xf32, #tpu.memory_space<vmem>>, vector<16x128xf32>,
    return
  }
  func.func @transform_0(%arg0: i32) -> (i32, i32) {
    %c0_i32 = arith.constant 0 : i32
    %c0_i32_0 = arith.constant 0 : i32
    return %arg0, %c0_i32 : i32, i32
  }
  func.func @transform_1(%arg0: i32) -> (i32, i32) {
    %c0_i32 = arith.constant 0 : i32
    %c0_i32_0 = arith.constant 0 : i32
    %c0_i32_1 = arith.constant 0 : i32
    return %c0_i32, %c0_i32_0 : i32, i32
  }
  func.func @transform_2(%arg0: i32) -> (i32, i32) {
    %c0_i32 = arith.constant 0 : i32
    %c0_i32_0 = arith.constant 0 : i32
    %c0_i32_1 = arith.constant 0 : i32
    return %c0_i32, %c0_i32_0 : i32, i32
  }
  func.func @transform_3(%arg0: i32) -> (i32, i32) {
    %c0_i32 = arith.constant 0 : i32
    %c0_i32_0 = arith.constant 0 : i32
    %c0_i32_1 = arith.constant 0 : i32
    return %c0_i32, %c0_i32_0 : i32, i32
  }
  func.func @transform_4(%arg0: i32) -> (i32, i32) {
    %c0_i32 = arith.constant 0 : i32
    %c0_i32_0 = arith.constant 0 : i32
    %c0_i32_1 = arith.constant 0 : i32
    return %c0_i32, %c0_i32_0 : i32, i32
  }
  func.func @transform_5(%arg0: i32) -> (i32, i32) {
    %c0_i32 = arith.constant 0 : i32
    %c0_i32_0 = arith.constant 0 : i32
    %c0_i32_1 = arith.constant 0 : i32
    return %c0_i32, %c0_i32_0 : i32, i32
  }
  func.func @transform_6(%arg0: i32) -> (i32, i32) {
    %c0_i32 = arith.constant 0 : i32
    %c0_i32_0 = arith.constant 0 : i32
    %c0_i32_1 = arith.constant 0 : i32
    return %c0_i32, %c0_i32_0 : i32, i32
  }
  func.func @transform_7(%arg0: i32) -> (i32, i32) {
    %c0_i32 = arith.constant 0 : i32
    %c0_i32_0 = arith.constant 0 : i32
    %c0_i32_1 = arith.constant 0 : i32
    return %c0_i32, %c0_i32_0 : i32, i32
  }
  func.func @transform_8(%arg0: i32) -> (i32, i32) {
    %c0_i32 = arith.constant 0 : i32
    %c0_i32_0 = arith.constant 0 : i32
    %c0_i32_1 = arith.constant 0 : i32
    return %c0_i32, %c0_i32_0 : i32, i32
  }
  func.func @transform_9(%arg0: i32) -> (i32, i32) {
    %c0_i32 = arith.constant 0 : i32
    %c0_i32_0 = arith.constant 0 : i32
    %c0_i32_1 = arith.constant 0 : i32
    return %c0_i32, %c0_i32_0 : i32, i32
  }
  func.func @transform_10(%arg0: i32) -> (i32, i32) {
    %c0_i32 = arith.constant 0 : i32
    %c0_i32_0 = arith.constant 0 : i32
    return %arg0, %c0_i32 : i32, i32
  }
}

</mosaic_0001>

<llo_original>
// kernel: mlpnorm.1
$region0: #{mlpnorm.1}
  #allocation0 [shape = 'u32[]', space=smem, size = 0x4, offset = 0x4, fixed_abs, tag = 'smem constant byte address 0x4 - core index']
  #allocation1 [shape = 'u32[144,128]{1,0:T(1,128)}', space=vmem, size = 0x12000, scoped, tag = 'internal scratch']
  %s0 = inlined_call_operand.vmem [shape: f32[16,128], index: 0, kind: input, shape index: {}]
  %s1 = inlined_call_operand.hbm [shape: f32[128,256], index: 1, kind: input, shape index: {}]
  %s2 = inlined_call_operand.vmem [shape: f32[256,256], index: 2, kind: input, shape index: {}]
  %s3 = inlined_call_operand.hbm [shape: f32[256,128], index: 3, kind: input, shape index: {}]
  %s4 = inlined_call_operand.vmem [shape: f32[128,128], index: 4, kind: input, shape index: {}]
  %s5 = inlined_call_operand.vmem [shape: f32[1,256], index: 5, kind: input, shape index: {}]
  %s6 = inlined_call_operand.vmem [shape: f32[1,256], index: 6, kind: input, shape index: {}]
  %s7 = inlined_call_operand.vmem [shape: f32[1,128], index: 7, kind: input, shape index: {}]
  %s8 = inlined_call_operand.vmem [shape: f32[1,128], index: 8, kind: input, shape index: {}]
  %s9 = inlined_call_operand.vmem [shape: f32[1,128], index: 9, kind: input, shape index: {}]
  %s10 = inlined_call_operand.vmem [shape: f32[16,128], index: 10, kind: output, shape index: {}]
  %s11 = sld [smem:[#allocation0]]
  $region58: #{mlpnorm.1} parent=0
    _
  %s13 = ssub.s32 1, %s11
  %s14 = scalar_select 0, %s13, %s11
  $region1: #{mlpnorm.1} parent=0
    #allocation2 [shape = 'u8[131072]{0}', space=vmem, size = 0x20000, scoped, tag = 'input window, operand 1, single buffered']
    #allocation3 [shape = 's32[1]{0}', space=sflag, size = 0x4, scoped, tag = 'scoped memory for mlpnorm.1']
    #allocation4 [shape = 'u8[131072]{0}', space=vmem, size = 0x20000, scoped, tag = 'input window, operand 3, single buffered']
    #allocation5 [shape = 's32[1]{0}', space=sflag, size = 0x4, scoped, tag = 'scoped memory for mlpnorm.1']
    %15 = vsyncpa [#allocation3], 0
    %16 = vsyncpa [#allocation5], 0
    // Predicated region
    $region2: #{mlpnorm.1} parent=1 // pred_check
      _
    $region3: #{mlpnorm.1} parent=1 // pred_check_branch
      %18 = sbr.rel (0) target = $region5
    $region4: #{mlpnorm.1} parent=1 // pred_region
      _
    $region5: #{mlpnorm.1} parent=1 // pred_fallthru
      _
    // Predicated region
    $region6: #{mlpnorm.1} parent=1 // pred_check
      _
    $region7: #{mlpnorm.1} parent=1 // pred_check_branch
      %20 = sbr.rel (0) target = $region9
    $region8: #{mlpnorm.1} parent=1 // pred_region
      %s22 = ssub.s32 4096, 4096
      %23 = vsyncadd [#allocation3], %s22
      %s24 = sshll.u32 [#allocation2], 4
      %s25 = int_to_ptr.vmem [resolvable:$true] %s24
      %30 = dma.hbm_to_vmem [thread:$0]  %s1, 4096, %s25, [#allocation3], 256, 256, 16
    $region9: #{mlpnorm.1} parent=1 // pred_fallthru
      _
    // Predicated region
    $region10: #{mlpnorm.1} parent=1 // pred_check
      _
    $region11: #{mlpnorm.1} parent=1 // pred_check_branch
      %32 = sbr.rel (0) target = $region13
    $region12: #{mlpnorm.1} parent=1 // pred_region
      _
    $region13: #{mlpnorm.1} parent=1 // pred_fallthru
      _
    // Predicated region
    $region14: #{mlpnorm.1} parent=1 // pred_check
      _
    $region15: #{mlpnorm.1} parent=1 // pred_check_branch
      %34 = sbr.rel (0) target = $region17
    $region16: #{mlpnorm.1} parent=1 // pred_region
      %s36 = ssub.s32 4096, 4096
      %37 = vsyncadd [#allocation5], %s36
      %s38 = sshll.u32 [#allocation4], 4
      %s39 = int_to_ptr.vmem [resolvable:$true] %s38
      %44 = dma.hbm_to_vmem [thread:$0]  %s3, 4096, %s39, [#allocation5], 128, 128, 8
    $region17: #{mlpnorm.1} parent=1 // pred_fallthru
      _
    // Predicated region
    $region18: #{mlpnorm.1} parent=1 // pred_check
      _
    $region19: #{mlpnorm.1} parent=1 // pred_check_branch
      %46 = sbr.rel (0) target = $region21
    $region20: #{mlpnorm.1} parent=1 // pred_region
      _
    $region21: #{mlpnorm.1} parent=1 // pred_fallthru
      _
    // Predicated region
    $region22: #{mlpnorm.1} parent=1 // pred_check
      _
    $region23: #{mlpnorm.1} parent=1 // pred_check_branch
      %48 = sbr.rel (0) target = $region25
    $region24: #{mlpnorm.1} parent=1 // pred_region
      _
    $region25: #{mlpnorm.1} parent=1 // pred_fallthru
      _
    // Predicated region
    $region26: #{mlpnorm.1} parent=1 // pred_check
      _
    $region27: #{mlpnorm.1} parent=1 // pred_check_branch
      %50 = sbr.rel (0) target = $region29
    $region28: #{mlpnorm.1} parent=1 // pred_region
      _
    $region29: #{mlpnorm.1} parent=1 // pred_fallthru
      _
    // Predicated region
    $region30: #{mlpnorm.1} parent=1 // pred_check
      _
    $region31: #{mlpnorm.1} parent=1 // pred_check_branch
      %52 = sbr.rel (0) target = $region33
    $region32: #{mlpnorm.1} parent=1 // pred_region
      _
    $region33: #{mlpnorm.1} parent=1 // pred_fallthru
      _
    // Predicated region
    $region34: #{mlpnorm.1} parent=1 // pred_check
      _
    $region35: #{mlpnorm.1} parent=1 // pred_check_branch
      %54 = sbr.rel (0) target = $region37
    $region36: #{mlpnorm.1} parent=1 // pred_region
      _
    $region37: #{mlpnorm.1} parent=1 // pred_fallthru
      _
    // Predicated region
    $region38: #{mlpnorm.1} parent=1 // pred_check
      _
    $region39: #{mlpnorm.1} parent=1 // pred_check_branch
      %56 = sbr.rel (0) target = $region41
    $region40: #{mlpnorm.1} parent=1 // pred_region
      _
    $region41: #{mlpnorm.1} parent=1 // pred_fallthru
      _
    // Predicated region
    $region42: #{mlpnorm.1} parent=1 // pred_check
      _
    $region43: #{mlpnorm.1} parent=1 // pred_check_branch
      %58 = sbr.rel (0) target = $region45
    $region44: #{mlpnorm.1} parent=1 // pred_region
      %59 = dma.done [#allocation3], 4096
    $region45: #{mlpnorm.1} parent=1 // pred_fallthru
      _
    // Predicated region
    $region46: #{mlpnorm.1} parent=1 // pred_check
      _
    $region47: #{mlpnorm.1} parent=1 // pred_check_branch
      %61 = sbr.rel (0) target = $region49
    $region48: #{mlpnorm.1} parent=1 // pred_region
      %62 = dma.done [#allocation5], 4096
    $region49: #{mlpnorm.1} parent=1 // pred_fallthru
      _
    %v63 = vld [vmem:[#allocation2] sm:$0xff]
    %v64 = vld [vmem:[#allocation2 + $0x8] sm:$0xff]
    %v65 = vld [vmem:[#allocation2 + $0x10] sm:$0xff]
    %v66 = vld [vmem:[#allocation2 + $0x18] sm:$0xff]
    %v67 = vld [vmem:[#allocation2 + $0x20] sm:$0xff]
    %v68 = vld [vmem:[#allocation2 + $0x28] sm:$0xff]
    %v69 = vld [vmem:[#allocation2 + $0x30] sm:$0xff]
    %v70 = vld [vmem:[#allocation2 + $0x38] sm:$0xff]
    %v71 = vld [vmem:[#allocation2 + $0x40] sm:$0xff]
    %v72 = vld [vmem:[#allocation2 + $0x48] sm:$0xff]
    %v73 = vld [vmem:[#allocation2 + $0x50] sm:$0xff]
    %v74 = vld [vmem:[#allocation2 + $0x58] sm:$0xff]
    %v75 = vld [vmem:[#allocation2 + $0x60] sm:$0xff]
    %v76 = vld [vmem:[#allocation2 + $0x68] sm:$0xff]
    %v77 = vld [vmem:[#allocation2 + $0x70] sm:$0xff]
    %v78 = vld [vmem:[#allocation2 + $0x78] sm:$0xff]
    %v79 = vld [vmem:[#allocation2 + $0x80] sm:$0xff]
    %v80 = vld [vmem:[#allocation2 + $0x88] sm:$0xff]
    %v81 = vld [vmem:[#allocation2 + $0x90] sm:$0xff]
    %v82 = vld [vmem:[#allocation2 + $0x98] sm:$0xff]
    %v83 = vld [vmem:[#allocation2 + $0xa0] sm:$0xff]
    %v84 = vld [vmem:[#allocation2 + $0xa8] sm:$0xff]
    %v85 = vld [vmem:[#allocation2 + $0xb0] sm:$0xff]
    %v86 = vld [vmem:[#allocation2 + $0xb8] sm:$0xff]
    %v87 = vld [vmem:[#allocation2 + $0xc0] sm:$0xff]
    %v88 = vld [vmem:[#allocation2 + $0xc8] sm:$0xff]
    %v89 = vld [vmem:[#allocation2 + $0xd0] sm:$0xff]
    %v90 = vld [vmem:[#allocation2 + $0xd8] sm:$0xff]
    %v91 = vld [vmem:[#allocation2 + $0xe0] sm:$0xff]
    %v92 = vld [vmem:[#allocation2 + $0xe8] sm:$0xff]
    %v93 = vld [vmem:[#allocation2 + $0xf0] sm:$0xff]
    %v94 = vld [vmem:[#allocation2 + $0xf8] sm:$0xff]
    %v95 = vld [vmem:[%s2] sm:$0xff]
    %v96 = vld [vmem:[%s2 + $0x8] sm:$0xff]
    %v97 = vld [vmem:[%s2 + $0x10] sm:$0xff]
    %v98 = vld [vmem:[%s2 + $0x18] sm:$0xff]
    %v99 = vld [vmem:[%s2 + $0x20] sm:$0xff]
    %v100 = vld [vmem:[%s2 + $0x28] sm:$0xff]
    %v101 = vld [vmem:[%s2 + $0x30] sm:$0xff]
    %v102 = vld [vmem:[%s2 + $0x38] sm:$0xff]
    %v103 = vld [vmem:[%s2 + $0x40] sm:$0xff]
    %v104 = vld [vmem:[%s2 + $0x48] sm:$0xff]
    %v105 = vld [vmem:[%s2 + $0x50] sm:$0xff]
    %v106 = vld [vmem:[%s2 + $0x58] sm:$0xff]
    %v107 = vld [vmem:[%s2 + $0x60] sm:$0xff]
    %v108 = vld [vmem:[%s2 + $0x68] sm:$0xff]
    %v109 = vld [vmem:[%s2 + $0x70] sm:$0xff]
    %v110 = vld [vmem:[%s2 + $0x78] sm:$0xff]
    %v111 = vld [vmem:[%s2 + $0x80] sm:$0xff]
    %v112 = vld [vmem:[%s2 + $0x88] sm:$0xff]
    %v113 = vld [vmem:[%s2 + $0x90] sm:$0xff]
    %v114 = vld [vmem:[%s2 + $0x98] sm:$0xff]
    %v115 = vld [vmem:[%s2 + $0xa0] sm:$0xff]
    %v116 = vld [vmem:[%s2 + $0xa8] sm:$0xff]
    %v117 = vld [vmem:[%s2 + $0xb0] sm:$0xff]
    %v118 = vld [vmem:[%s2 + $0xb8] sm:$0xff]
    %v119 = vld [vmem:[%s2 + $0xc0] sm:$0xff]
    %v120 = vld [vmem:[%s2 + $0xc8] sm:$0xff]
    %v121 = vld [vmem:[%s2 + $0xd0] sm:$0xff]
    %v122 = vld [vmem:[%s2 + $0xd8] sm:$0xff]
    %v123 = vld [vmem:[%s2 + $0xe0] sm:$0xff]
    %v124 = vld [vmem:[%s2 + $0xe8] sm:$0xff]
    %v125 = vld [vmem:[%s2 + $0xf0] sm:$0xff]
    %v126 = vld [vmem:[%s2 + $0xf8] sm:$0xff]
    %v127 = vld [vmem:[%s2 + $0x100] sm:$0xff]
    %v128 = vld [vmem:[%s2 + $0x108] sm:$0xff]
    %v129 = vld [vmem:[%s2 + $0x110] sm:$0xff]
    %v130 = vld [vmem:[%s2 + $0x118] sm:$0xff]
    %v131 = vld [vmem:[%s2 + $0x120] sm:$0xff]
    %v132 = vld [vmem:[%s2 + $0x128] sm:$0xff]
    %v133 = vld [vmem:[%s2 + $0x130] sm:$0xff]
    %v134 = vld [vmem:[%s2 + $0x138] sm:$0xff]
    %v135 = vld [vmem:[%s2 + $0x140] sm:$0xff]
    %v136 = vld [vmem:[%s2 + $0x148] sm:$0xff]
    %v137 = vld [vmem:[%s2 + $0x150] sm:$0xff]
    %v138 = vld [vmem:[%s2 + $0x158] sm:$0xff]
    %v139 = vld [vmem:[%s2 + $0x160] sm:$0xff]
    %v140 = vld [vmem:[%s2 + $0x168] sm:$0xff]
    %v141 = vld [vmem:[%s2 + $0x170] sm:$0xff]
    %v142 = vld [vmem:[%s2 + $0x178] sm:$0xff]
    %v143 = vld [vmem:[%s2 + $0x180] sm:$0xff]
    %v144 = vld [vmem:[%s2 + $0x188] sm:$0xff]
    %v145 = vld [vmem:[%s2 + $0x190] sm:$0xff]
    %v146 = vld [vmem:[%s2 + $0x198] sm:$0xff]
    %v147 = vld [vmem:[%s2 + $0x1a0] sm:$0xff]
    %v148 = vld [vmem:[%s2 + $0x1a8] sm:$0xff]
    %v149 = vld [vmem:[%s2 + $0x1b0] sm:$0xff]
    %v150 = vld [vmem:[%s2 + $0x1b8] sm:$0xff]
    %v151 = vld [vmem:[%s2 + $0x1c0] sm:$0xff]
    %v152 = vld [vmem:[%s2 + $0x1c8] sm:$0xff]
    %v153 = vld [vmem:[%s2 + $0x1d0] sm:$0xff]
    %v154 = vld [vmem:[%s2 + $0x1d8] sm:$0xff]
    %v155 = vld [vmem:[%s2 + $0x1e0] sm:$0xff]
    %v156 = vld [vmem:[%s2 + $0x1e8] sm:$0xff]
    %v157 = vld [vmem:[%s2 + $0x1f0] sm:$0xff]
    %v158 = vld [vmem:[%s2 + $0x1f8] sm:$0xff]
    %v159 = vld [vmem:[#allocation4] sm:$0xff]
    %v160 = vld [vmem:[#allocation4 + $0x8] sm:$0xff]
    %v161 = vld [vmem:[#allocation4 + $0x10] sm:$0xff]
    %v162 = vld [vmem:[#allocation4 + $0x18] sm:$0xff]
    %v163 = vld [vmem:[#allocation4 + $0x20] sm:$0xff]
    %v164 = vld [vmem:[#allocation4 + $0x28] sm:$0xff]
    %v165 = vld [vmem:[#allocation4 + $0x30] sm:$0xff]
    %v166 = vld [vmem:[#allocation4 + $0x38] sm:$0xff]
    %v167 = vld [vmem:[#allocation4 + $0x40] sm:$0xff]
    %v168 = vld [vmem:[#allocation4 + $0x48] sm:$0xff]
    %v169 = vld [vmem:[#allocation4 + $0x50] sm:$0xff]
    %v170 = vld [vmem:[#allocation4 + $0x58] sm:$0xff]
    %v171 = vld [vmem:[#allocation4 + $0x60] sm:$0xff]
    %v172 = vld [vmem:[#allocation4 + $0x68] sm:$0xff]
    %v173 = vld [vmem:[#allocation4 + $0x70] sm:$0xff]
    %v174 = vld [vmem:[#allocation4 + $0x78] sm:$0xff]
    %v175 = vld [vmem:[#allocation4 + $0x80] sm:$0xff]
    %v176 = vld [vmem:[#allocation4 + $0x88] sm:$0xff]
    %v177 = vld [vmem:[#allocation4 + $0x90] sm:$0xff]
    %v178 = vld [vmem:[#allocation4 + $0x98] sm:$0xff]
    %v179 = vld [vmem:[#allocation4 + $0xa0] sm:$0xff]
    %v180 = vld [vmem:[#allocation4 + $0xa8] sm:$0xff]
    %v181 = vld [vmem:[#allocation4 + $0xb0] sm:$0xff]
    %v182 = vld [vmem:[#allocation4 + $0xb8] sm:$0xff]
    %v183 = vld [vmem:[#allocation4 + $0xc0] sm:$0xff]
    %v184 = vld [vmem:[#allocation4 + $0xc8] sm:$0xff]
    %v185 = vld [vmem:[#allocation4 + $0xd0] sm:$0xff]
    %v186 = vld [vmem:[#allocation4 + $0xd8] sm:$0xff]
    %v187 = vld [vmem:[#allocation4 + $0xe0] sm:$0xff]
    %v188 = vld [vmem:[#allocation4 + $0xe8] sm:$0xff]
    %v189 = vld [vmem:[#allocation4 + $0xf0] sm:$0xff]
    %v190 = vld [vmem:[#allocation4 + $0xf8] sm:$0xff]
    %v191 = vld [vmem:[%s0] sm:$0xff]
    %v192 = vld [vmem:[%s0 + $0x8] sm:$0xff]
    %v193 = vld [vmem:[%s5] sm:$0x3]
    %v195 = vlaneseq
    %v196 = vshrl.u32 %v195, 7
    %v197 = vsub.s32 0, %v196
    %v198 = vrot.slane %v193, %v197
    %v199 = vlaneseq
    %v200 = vshrl.u32 %v199, 7
    %v201 = vsub.s32 1, %v200
    %v202 = vrot.slane %v193, %v201
    %205 = vmatprep.subr.mxu0 %v94
    %206 = vmatpush1.msra.mxu0 %v93
    %207 = vmatprep.subr.mxu0 %v92
    %208 = vmatpush1.msra.mxu0 %v91
    %209 = vmatprep.subr.mxu0 %v90
    %210 = vmatpush1.msra.mxu0 %v89
    %211 = vmatprep.subr.mxu0 %v88
    %212 = vmatpush1.msra.mxu0 %v87
    %213 = vmatprep.subr.mxu0 %v86
    %214 = vmatpush1.msra.mxu0 %v85
    %215 = vmatprep.subr.mxu0 %v84
    %216 = vmatpush1.msra.mxu0 %v83
    %217 = vmatprep.subr.mxu0 %v82
    %218 = vmatpush1.msra.mxu0 %v81
    %219 = vmatprep.subr.mxu0 %v80
    %220 = vmatpush1.msra.mxu0 %v79
    %221 = vmatprep.subr.mxu0 %v78
    %222 = vmatpush1.msra.mxu0 %v77
    %223 = vmatprep.subr.mxu0 %v76
    %224 = vmatpush1.msra.mxu0 %v75
    %225 = vmatprep.subr.mxu0 %v74
    %226 = vmatpush1.msra.mxu0 %v73
    %227 = vmatprep.subr.mxu0 %v72
    %228 = vmatpush1.msra.mxu0 %v71
    %229 = vmatprep.subr.mxu0 %v70
    %230 = vmatpush1.msra.mxu0 %v69
    %231 = vmatprep.subr.mxu0 %v68
    %232 = vmatpush1.msra.mxu0 %v67
    %233 = vmatprep.subr.mxu0 %v66
    %234 = vmatpush1.msra.mxu0 %v65
    %235 = vmatprep.subr.mxu0 %v64
    %236 = vmatpush1.msra.mxu0 %v63
    %237 = vmatprep.subr.mxu0 0.0
    %238 = vmatpush2.msra.mxu0 0.0
    %239 = vmatprep.subr.mxu0 0.0
    %240 = vmatpush2.msra.mxu0 0.0
    %241 = vmatprep.subr.mxu0 0.0
    %242 = vmatpush2.msra.mxu0 0.0
    %243 = vmatprep.subr.mxu0 0.0
    %244 = vmatpush2.msra.mxu0 0.0
    %245 = vmatprep.subr.mxu0 0.0
    %246 = vmatpush2.msra.mxu0 0.0
    %247 = vmatprep.subr.mxu0 0.0
    %248 = vmatpush2.msra.mxu0 0.0
    %249 = vmatprep.subr.mxu0 0.0
    %250 = vmatpush2.msra.mxu0 0.0
    %251 = vmatprep.subr.mxu0 0.0
    %252 = vmatpush2.msra.mxu0 0.0
    %253 = vmatprep.subr.mxu0 0.0
    %254 = vmatpush2.msra.mxu0 0.0
    %255 = vmatprep.subr.mxu0 0.0
    %256 = vmatpush2.msra.mxu0 0.0
    %257 = vmatprep.subr.mxu0 0.0
    %258 = vmatpush2.msra.mxu0 0.0
    %259 = vmatprep.subr.mxu0 0.0
    %260 = vmatpush2.msra.mxu0 0.0
    %261 = vmatprep.subr.mxu0 0.0
    %262 = vmatpush2.msra.mxu0 0.0
    %263 = vmatprep.subr.mxu0 0.0
    %264 = vmatpush2.msra.mxu0 0.0
    %265 = vmatprep.subr.mxu0 0.0
    %266 = vmatpush2.msra.mxu0 0.0
    %267 = vmatprep.subr.mxu0 0.0
    %268 = vmatpush2.msra.mxu0 0.0
    %269 = vmatprep.mubr.f32.mxu0 0.0
    %270 = vmatmul.mubr.f32.gmra.mxu0 %v191
    %v271 = vpop.f32.mrf.mxu0
    %v272 = vadd.f32 %v198, %v271
    %v273 = vpop.f32.mrf.mxu0
    %v274 = vadd.f32 %v202, %v273
    %275 = vmatprep.mubr.f32.mxu0 0.0
    %276 = vmatmul.mubr.f32.gmra.mxu0 %v192
    %v277 = vpop.f32.mrf.mxu0
    %v278 = vadd.f32 %v198, %v277
    %v279 = vpop.f32.mrf.mxu0
    %v280 = vadd.f32 %v202, %v279
    %281 = vdwg.mxu0
    %v282 = vmul.f32 %v272, 0.5
    %v283 = vmul.f32 %v274, 0.5
    %v284 = vmul.f32 %v278, 0.5
    %v285 = vmul.f32 %v280, 0.5
    %v286 = vmul.f32 %v272, 0.70710677
    %v287 = vmul.f32 %v274, 0.70710677
    %v288 = vmul.f32 %v278, 0.70710677
    %v289 = vmul.f32 %v280, 0.70710677
    %v290 = verf.f32.pop %v286
    %v291 = verf.f32.pop %v287
    %v292 = verf.f32.pop %v288
    %v293 = verf.f32.pop %v289
    %v294 = vadd.f32 %v290, 1.0
    %v295 = vadd.f32 %v291, 1.0
    %v296 = vadd.f32 %v292, 1.0
    %v297 = vadd.f32 %v293, 1.0
    %v298 = vmul.f32 %v282, %v294
    %v299 = vmul.f32 %v283, %v295
    %v300 = vmul.f32 %v284, %v296
    %v301 = vmul.f32 %v285, %v297
    %v302 = vld [vmem:[%s6] sm:$0x3]
    %v304 = vlaneseq
    %v305 = vshrl.u32 %v304, 7
    %v306 = vsub.s32 0, %v305
    %v307 = vrot.slane %v302, %v306
    %v308 = vlaneseq
    %v309 = vshrl.u32 %v308, 7
    %v310 = vsub.s32 1, %v309
    %v311 = vrot.slane %v302, %v310
    %314 = vmatprep.subr.mxu0 %v126
    %315 = vmatpush1.msra.mxu0 %v125
    %316 = vmatprep.subr.mxu0 %v124
    %317 = vmatpush1.msra.mxu0 %v123
    %318 = vmatprep.subr.mxu0 %v122
    %319 = vmatpush1.msra.mxu0 %v121
    %320 = vmatprep.subr.mxu0 %v120
    %321 = vmatpush1.msra.mxu0 %v119
    %322 = vmatprep.subr.mxu0 %v118
    %323 = vmatpush1.msra.mxu0 %v117
    %324 = vmatprep.subr.mxu0 %v116
    %325 = vmatpush1.msra.mxu0 %v115
    %326 = vmatprep.subr.mxu0 %v114
    %327 = vmatpush1.msra.mxu0 %v113
    %328 = vmatprep.subr.mxu0 %v112
    %329 = vmatpush1.msra.mxu0 %v111
    %330 = vmatprep.subr.mxu0 %v110
    %331 = vmatpush1.msra.mxu0 %v109
    %332 = vmatprep.subr.mxu0 %v108
    %333 = vmatpush1.msra.mxu0 %v107
    %334 = vmatprep.subr.mxu0 %v106
    %335 = vmatpush1.msra.mxu0 %v105
    %336 = vmatprep.subr.mxu0 %v104
    %337 = vmatpush1.msra.mxu0 %v103
    %338 = vmatprep.subr.mxu0 %v102
    %339 = vmatpush1.msra.mxu0 %v101
    %340 = vmatprep.subr.mxu0 %v100
    %341 = vmatpush1.msra.mxu0 %v99
    %342 = vmatprep.subr.mxu0 %v98
    %343 = vmatpush1.msra.mxu0 %v97
    %344 = vmatprep.subr.mxu0 %v96
    %345 = vmatpush1.msra.mxu0 %v95
    %346 = vmatprep.subr.mxu0 %v158
    %347 = vmatpush2.msra.mxu0 %v157
    %348 = vmatprep.subr.mxu0 %v156
    %349 = vmatpush2.msra.mxu0 %v155
    %350 = vmatprep.subr.mxu0 %v154
    %351 = vmatpush2.msra.mxu0 %v153
    %352 = vmatprep.subr.mxu0 %v152
    %353 = vmatpush2.msra.mxu0 %v151
    %354 = vmatprep.subr.mxu0 %v150
    %355 = vmatpush2.msra.mxu0 %v149
    %356 = vmatprep.subr.mxu0 %v148
    %357 = vmatpush2.msra.mxu0 %v147
    %358 = vmatprep.subr.mxu0 %v146
    %359 = vmatpush2.msra.mxu0 %v145
    %360 = vmatprep.subr.mxu0 %v144
    %361 = vmatpush2.msra.mxu0 %v143
    %362 = vmatprep.subr.mxu0 %v142
    %363 = vmatpush2.msra.mxu0 %v141
    %364 = vmatprep.subr.mxu0 %v140
    %365 = vmatpush2.msra.mxu0 %v139
    %366 = vmatprep.subr.mxu0 %v138
    %367 = vmatpush2.msra.mxu0 %v137
    %368 = vmatprep.subr.mxu0 %v136
    %369 = vmatpush2.msra.mxu0 %v135
    %370 = vmatprep.subr.mxu0 %v134
    %371 = vmatpush2.msra.mxu0 %v133
    %372 = vmatprep.subr.mxu0 %v132
    %373 = vmatpush2.msra.mxu0 %v131
    %374 = vmatprep.subr.mxu0 %v130
    %375 = vmatpush2.msra.mxu0 %v129
    %376 = vmatprep.subr.mxu0 %v128
    %377 = vmatpush2.msra.mxu0 %v127
    %378 = vmatprep.mubr.f32.mxu0 %v299
    %379 = vmatmul.mubr.f32.gmra.mxu0 %v298
    %v380 = vpop.f32.mrf.mxu0
    %v381 = vadd.f32 %v307, %v380
    %v382 = vpop.f32.mrf.mxu0
    %v383 = vadd.f32 %v311, %v382
    %384 = vmatprep.mubr.f32.mxu0 %v301
    %385 = vmatmul.mubr.f32.gmra.mxu0 %v300
    %v386 = vpop.f32.mrf.mxu0
    %v387 = vadd.f32 %v307, %v386
    %v388 = vpop.f32.mrf.mxu0
    %v389 = vadd.f32 %v311, %v388
    %390 = vdwg.mxu0
    %v391 = vmul.f32 %v381, 0.5
    %v392 = vmul.f32 %v383, 0.5
    %v393 = vmul.f32 %v387, 0.5
    %v394 = vmul.f32 %v389, 0.5
    %v395 = vmul.f32 %v381, 0.70710677
    %v396 = vmul.f32 %v383, 0.70710677
    %v397 = vmul.f32 %v387, 0.70710677
    %v398 = vmul.f32 %v389, 0.70710677
    %v399 = verf.f32.pop %v395
    %v400 = verf.f32.pop %v396
    %v401 = verf.f32.pop %v397
    %v402 = verf.f32.pop %v398
    %v403 = vadd.f32 %v399, 1.0
    %v404 = vadd.f32 %v400, 1.0
    %v405 = vadd.f32 %v401, 1.0
    %v406 = vadd.f32 %v402, 1.0
    %v407 = vmul.f32 %v391, %v403
    %v408 = vmul.f32 %v392, %v404
    %v409 = vmul.f32 %v393, %v405
    %v410 = vmul.f32 %v394, %v406
    %v411 = vld [vmem:[%s7] sm:$0x1]
    %v413 = vlaneseq
    %v414 = vshrl.u32 %v413, 7
    %v415 = vsub.s32 0, %v414
    %v416 = vrot.slane %v411, %v415
    %418 = vmatprep.subr.mxu0 0.0
    %419 = vmatpush1.msra.mxu0 %v174
    %420 = vmatprep.subr.mxu0 0.0
    %421 = vmatpush1.msra.mxu0 %v173
    %422 = vmatprep.subr.mxu0 0.0
    %423 = vmatpush1.msra.mxu0 %v172
    %424 = vmatprep.subr.mxu0 0.0
    %425 = vmatpush1.msra.mxu0 %v171
    %426 = vmatprep.subr.mxu0 0.0
    %427 = vmatpush1.msra.mxu0 %v170
    %428 = vmatprep.subr.mxu0 0.0
    %429 = vmatpush1.msra.mxu0 %v169
    %430 = vmatprep.subr.mxu0 0.0
    %431 = vmatpush1.msra.mxu0 %v168
    %432 = vmatprep.subr.mxu0 0.0
    %433 = vmatpush1.msra.mxu0 %v167
    %434 = vmatprep.subr.mxu0 0.0
    %435 = vmatpush1.msra.mxu0 %v166
    %436 = vmatprep.subr.mxu0 0.0
    %437 = vmatpush1.msra.mxu0 %v165
    %438 = vmatprep.subr.mxu0 0.0
    %439 = vmatpush1.msra.mxu0 %v164
    %440 = vmatprep.subr.mxu0 0.0
    %441 = vmatpush1.msra.mxu0 %v163
    %442 = vmatprep.subr.mxu0 0.0
    %443 = vmatpush1.msra.mxu0 %v162
    %444 = vmatprep.subr.mxu0 0.0
    %445 = vmatpush1.msra.mxu0 %v161
    %446 = vmatprep.subr.mxu0 0.0
    %447 = vmatpush1.msra.mxu0 %v160
    %448 = vmatprep.subr.mxu0 0.0
    %449 = vmatpush1.msra.mxu0 %v159
    %450 = vmatprep.subr.mxu0 0.0
    %451 = vmatpush2.msra.mxu0 %v190
    %452 = vmatprep.subr.mxu0 0.0
    %453 = vmatpush2.msra.mxu0 %v189
    %454 = vmatprep.subr.mxu0 0.0
    %455 = vmatpush2.msra.mxu0 %v188
    %456 = vmatprep.subr.mxu0 0.0
    %457 = vmatpush2.msra.mxu0 %v187
    %458 = vmatprep.subr.mxu0 0.0
    %459 = vmatpush2.msra.mxu0 %v186
    %460 = vmatprep.subr.mxu0 0.0
    %461 = vmatpush2.msra.mxu0 %v185
    %462 = vmatprep.subr.mxu0 0.0
    %463 = vmatpush2.msra.mxu0 %v184
    %464 = vmatprep.subr.mxu0 0.0
    %465 = vmatpush2.msra.mxu0 %v183
    %466 = vmatprep.subr.mxu0 0.0
    %467 = vmatpush2.msra.mxu0 %v182
    %468 = vmatprep.subr.mxu0 0.0
    %469 = vmatpush2.msra.mxu0 %v181
    %470 = vmatprep.subr.mxu0 0.0
    %471 = vmatpush2.msra.mxu0 %v180
    %472 = vmatprep.subr.mxu0 0.0
    %473 = vmatpush2.msra.mxu0 %v179
    %474 = vmatprep.subr.mxu0 0.0
    %475 = vmatpush2.msra.mxu0 %v178
    %476 = vmatprep.subr.mxu0 0.0
    %477 = vmatpush2.msra.mxu0 %v177
    %478 = vmatprep.subr.mxu0 0.0
    %479 = vmatpush2.msra.mxu0 %v176
    %480 = vmatprep.subr.mxu0 0.0
    %481 = vmatpush2.msra.mxu0 %v175
    %482 = vmatprep.mubr.f32.mxu0 %v408
    %483 = vmatmul.mubr.f32.gmra.mxu0 %v407
    %v484 = vpop.f32.mrf.mxu0
    %v485 = vadd.f32 %v416, %v484
    %v486 = vpop.f32.mrf.mxu0
    %487 = vmatprep.mubr.f32.mxu0 %v410
    %488 = vmatmul.mubr.f32.gmra.mxu0 %v409
    %v489 = vpop.f32.mrf.mxu0
    %v490 = vadd.f32 %v416, %v489
    %v491 = vpop.f32.mrf.mxu0
    %492 = vdwg.mxu0
    %v493 = vld [vmem:[%s4] sm:$0xff]
    %v494 = vld [vmem:[%s4 + $0x8] sm:$0xff]
    %v495 = vld [vmem:[%s4 + $0x10] sm:$0xff]
    %v496 = vld [vmem:[%s4 + $0x18] sm:$0xff]
    %v497 = vld [vmem:[%s4 + $0x20] sm:$0xff]
    %v498 = vld [vmem:[%s4 + $0x28] sm:$0xff]
    %v499 = vld [vmem:[%s4 + $0x30] sm:$0xff]
    %v500 = vld [vmem:[%s4 + $0x38] sm:$0xff]
    %v501 = vld [vmem:[%s4 + $0x40] sm:$0xff]
    %v502 = vld [vmem:[%s4 + $0x48] sm:$0xff]
    %v503 = vld [vmem:[%s4 + $0x50] sm:$0xff]
    %v504 = vld [vmem:[%s4 + $0x58] sm:$0xff]
    %v505 = vld [vmem:[%s4 + $0x60] sm:$0xff]
    %v506 = vld [vmem:[%s4 + $0x68] sm:$0xff]
    %v507 = vld [vmem:[%s4 + $0x70] sm:$0xff]
    %v508 = vld [vmem:[%s4 + $0x78] sm:$0xff]
    %509 = vmatprep.subr.mxu0 0.0
    %510 = vmatpush1.msra.mxu0 %v508
    %511 = vmatprep.subr.mxu0 0.0
    %512 = vmatpush1.msra.mxu0 %v507
    %513 = vmatprep.subr.mxu0 0.0
    %514 = vmatpush1.msra.mxu0 %v506
    %515 = vmatprep.subr.mxu0 0.0
    %516 = vmatpush1.msra.mxu0 %v505
    %517 = vmatprep.subr.mxu0 0.0
    %518 = vmatpush1.msra.mxu0 %v504
    %519 = vmatprep.subr.mxu0 0.0
    %520 = vmatpush1.msra.mxu0 %v503
    %521 = vmatprep.subr.mxu0 0.0
    %522 = vmatpush1.msra.mxu0 %v502
    %523 = vmatprep.subr.mxu0 0.0
    %524 = vmatpush1.msra.mxu0 %v501
    %525 = vmatprep.subr.mxu0 0.0
    %526 = vmatpush1.msra.mxu0 %v500
    %527 = vmatprep.subr.mxu0 0.0
    %528 = vmatpush1.msra.mxu0 %v499
    %529 = vmatprep.subr.mxu0 0.0
    %530 = vmatpush1.msra.mxu0 %v498
    %531 = vmatprep.subr.mxu0 0.0
    %532 = vmatpush1.msra.mxu0 %v497
    %533 = vmatprep.subr.mxu0 0.0
    %534 = vmatpush1.msra.mxu0 %v496
    %535 = vmatprep.subr.mxu0 0.0
    %536 = vmatpush1.msra.mxu0 %v495
    %537 = vmatprep.subr.mxu0 0.0
    %538 = vmatpush1.msra.mxu0 %v494
    %539 = vmatprep.subr.mxu0 0.0
    %540 = vmatpush1.msra.mxu0 %v493
    %541 = vmatprep.subr.mxu0 0.0
    %542 = vmatpush2.msra.mxu0 0.0
    %543 = vmatprep.subr.mxu0 0.0
    %544 = vmatpush2.msra.mxu0 0.0
    %545 = vmatprep.subr.mxu0 0.0
    %546 = vmatpush2.msra.mxu0 0.0
    %547 = vmatprep.subr.mxu0 0.0
    %548 = vmatpush2.msra.mxu0 0.0
    %549 = vmatprep.subr.mxu0 0.0
    %550 = vmatpush2.msra.mxu0 0.0
    %551 = vmatprep.subr.mxu0 0.0
    %552 = vmatpush2.msra.mxu0 0.0
    %553 = vmatprep.subr.mxu0 0.0
    %554 = vmatpush2.msra.mxu0 0.0
    %555 = vmatprep.subr.mxu0 0.0
    %556 = vmatpush2.msra.mxu0 0.0
    %557 = vmatprep.subr.mxu0 0.0
    %558 = vmatpush2.msra.mxu0 0.0
    %559 = vmatprep.subr.mxu0 0.0
    %560 = vmatpush2.msra.mxu0 0.0
    %561 = vmatprep.subr.mxu0 0.0
    %562 = vmatpush2.msra.mxu0 0.0
    %563 = vmatprep.subr.mxu0 0.0
    %564 = vmatpush2.msra.mxu0 0.0
    %565 = vmatprep.subr.mxu0 0.0
    %566 = vmatpush2.msra.mxu0 0.0
    %567 = vmatprep.subr.mxu0 0.0
    %568 = vmatpush2.msra.mxu0 0.0
    %569 = vmatprep.subr.mxu0 0.0
    %570 = vmatpush2.msra.mxu0 0.0
    %571 = vmatprep.subr.mxu0 0.0
    %572 = vmatpush2.msra.mxu0 0.0
    %573 = vmatprep.mubr.f32.mxu0 0.0
    %574 = vmatmul.mubr.f32.gmra.mxu0 %v485
    %v575 = vpop.f32.mrf.mxu0
    %v576 = vadd.f32 0.0, %v575
    %v577 = vpop.f32.mrf.mxu0
    %578 = vmatprep.mubr.f32.mxu0 0.0
    %579 = vmatmul.mubr.f32.gmra.mxu0 %v490
    %v580 = vpop.f32.mrf.mxu0
    %v581 = vadd.f32 0.0, %v580
    %v582 = vpop.f32.mrf.mxu0
    %583 = vdwg.mxu0
    %v584 = vmul.f32 %v576, 0.0625
    %v585 = vmul.f32 %v581, 0.0625
    %v586 = vsub.f32 %v485, %v584
    %v587 = vsub.f32 %v490, %v585
    %v588 = vmul.f32 %v586, %v586
    %v589 = vmul.f32 %v587, %v587
    %590 = vmatprep.subr.mxu0 0.0
    %591 = vmatpush1.msra.mxu0 %v508
    %592 = vmatprep.subr.mxu0 0.0
    %593 = vmatpush1.msra.mxu0 %v507
    %594 = vmatprep.subr.mxu0 0.0
    %595 = vmatpush1.msra.mxu0 %v506
    %596 = vmatprep.subr.mxu0 0.0
    %597 = vmatpush1.msra.mxu0 %v505
    %598 = vmatprep.subr.mxu0 0.0
    %599 = vmatpush1.msra.mxu0 %v504
    %600 = vmatprep.subr.mxu0 0.0
    %601 = vmatpush1.msra.mxu0 %v503
    %602 = vmatprep.subr.mxu0 0.0
    %603 = vmatpush1.msra.mxu0 %v502
    %604 = vmatprep.subr.mxu0 0.0
    %605 = vmatpush1.msra.mxu0 %v501
    %606 = vmatprep.subr.mxu0 0.0
    %607 = vmatpush1.msra.mxu0 %v500
    %608 = vmatprep.subr.mxu0 0.0
    %609 = vmatpush1.msra.mxu0 %v499
    %610 = vmatprep.subr.mxu0 0.0
    %611 = vmatpush1.msra.mxu0 %v498
    %612 = vmatprep.subr.mxu0 0.0
    %613 = vmatpush1.msra.mxu0 %v497
    %614 = vmatprep.subr.mxu0 0.0
    %615 = vmatpush1.msra.mxu0 %v496
    %616 = vmatprep.subr.mxu0 0.0
    %617 = vmatpush1.msra.mxu0 %v495
    %618 = vmatprep.subr.mxu0 0.0
    %619 = vmatpush1.msra.mxu0 %v494
    %620 = vmatprep.subr.mxu0 0.0
    %621 = vmatpush1.msra.mxu0 %v493
    %622 = vmatprep.subr.mxu0 0.0
    %623 = vmatpush2.msra.mxu0 0.0
    %624 = vmatprep.subr.mxu0 0.0
    %625 = vmatpush2.msra.mxu0 0.0
    %626 = vmatprep.subr.mxu0 0.0
    %627 = vmatpush2.msra.mxu0 0.0
    %628 = vmatprep.subr.mxu0 0.0
    %629 = vmatpush2.msra.mxu0 0.0
    %630 = vmatprep.subr.mxu0 0.0
    %631 = vmatpush2.msra.mxu0 0.0
    %632 = vmatprep.subr.mxu0 0.0
    %633 = vmatpush2.msra.mxu0 0.0
    %634 = vmatprep.subr.mxu0 0.0
    %635 = vmatpush2.msra.mxu0 0.0
    %636 = vmatprep.subr.mxu0 0.0
    %637 = vmatpush2.msra.mxu0 0.0
    %638 = vmatprep.subr.mxu0 0.0
    %639 = vmatpush2.msra.mxu0 0.0
    %640 = vmatprep.subr.mxu0 0.0
    %641 = vmatpush2.msra.mxu0 0.0
    %642 = vmatprep.subr.mxu0 0.0
    %643 = vmatpush2.msra.mxu0 0.0
    %644 = vmatprep.subr.mxu0 0.0
    %645 = vmatpush2.msra.mxu0 0.0
    %646 = vmatprep.subr.mxu0 0.0
    %647 = vmatpush2.msra.mxu0 0.0
    %648 = vmatprep.subr.mxu0 0.0
    %649 = vmatpush2.msra.mxu0 0.0
    %650 = vmatprep.subr.mxu0 0.0
    %651 = vmatpush2.msra.mxu0 0.0
    %652 = vmatprep.subr.mxu0 0.0
    %653 = vmatpush2.msra.mxu0 0.0
    %654 = vmatprep.mubr.f32.mxu0 0.0
    %655 = vmatmul.mubr.f32.gmra.mxu0 %v588
    %v656 = vpop.f32.mrf.mxu0
    %v657 = vadd.f32 0.0, %v656
    %v658 = vpop.f32.mrf.mxu0
    %659 = vmatprep.mubr.f32.mxu0 0.0
    %660 = vmatmul.mubr.f32.gmra.mxu0 %v589
    %v661 = vpop.f32.mrf.mxu0
    %v662 = vadd.f32 0.0, %v661
    %v663 = vpop.f32.mrf.mxu0
    %664 = vdwg.mxu0
    %v665 = vmul.f32 %v657, 0.0625
    %v666 = vmul.f32 %v662, 0.0625
    %v667 = vadd.f32 %v665, 1e-05
    %v668 = vadd.f32 %v666, 1e-05
    %v669 = vrsqrt.pop %v667
    %v670 = vrsqrt.pop %v668
    %v671 = vmul.f32 %v586, %v669
    %v672 = vmul.f32 %v587, %v670
    %v673 = vld [vmem:[%s8] sm:$0x1]
    %v675 = vlaneseq
    %v676 = vshrl.u32 %v675, 7
    %v677 = vsub.s32 0, %v676
    %v678 = vrot.slane %v673, %v677
    %v680 = vmul.f32 %v671, %v678
    %v681 = vmul.f32 %v672, %v678
    %v682 = vld [vmem:[%s9] sm:$0x1]
    %v684 = vlaneseq
    %v685 = vshrl.u32 %v684, 7
    %v686 = vsub.s32 0, %v685
    %v687 = vrot.slane %v682, %v686
    %v689 = vadd.f32 %v680, %v687
    %v690 = vadd.f32 %v681, %v687
    %691 = vst [vmem:[%s10] sm:$0xff] %v689
    %692 = vst [vmem:[%s10 + $0x8] sm:$0xff] %v690
    // Predicated region
    $region50: #{mlpnorm.1} parent=1 // pred_check
      _
    $region51: #{mlpnorm.1} parent=1 // pred_check_branch
      %694 = sbr.rel (0) target = $region53
    $region52: #{mlpnorm.1} parent=1 // pred_region
      _
    $region53: #{mlpnorm.1} parent=1 // pred_fallthru
      _
    // Predicated region
    $region54: #{mlpnorm.1} parent=1 // pred_check
      _
    $region55: #{mlpnorm.1} parent=1 // pred_check_branch
      %696 = sbr.rel (0) target = $region57
    $region56: #{mlpnorm.1} parent=1 // pred_region
      _
    $region57: #{mlpnorm.1} parent=1 // pred_fallthru
      _
    %697 = vsyncpa [#allocation3], 1
    %698 = vsyncpa [#allocation5], 1

</llo_original>
